<compile_context>
chip_gen: v7x
topology: tpu7x:2x2x1
jax: 0.10.0
libtpu: 0.0.40
codegen_flags: <defaults>
</compile_context>

<pallas_src>
import functools
import math

import jax
import jax.numpy as jnp
from jax.experimental import pallas as pl
from jax.experimental.pallas import tpu as pltpu

LANE = 128


def _binarize_gate_kernel(sel_ref, x_ref, o_ref, *, size, n_parts):
    """sel_ref: SMEM (1,) i32 prefetch; x_ref: (tr, LANE*size) natural-layout tile
    (lane j holds candidate j%size of output element j//size); o_ref: (tr, LANE)."""
    sel = sel_ref[0]
    k = size * LANE

    # One-hot selection/compaction matrix: S[j, e] = (j == e*size + sel).
    # Built per grid step from iotas (cheap VALU work, hidden under the block DMA;
    # per-core-safe, unlike a pl.when(pid==0)-guarded scratch init under megacore).
    j_idx = jax.lax.broadcasted_iota(jnp.int32, (k, LANE), 0)
    e_idx = jax.lax.broadcasted_iota(jnp.int32, (k, LANE), 1)
    s = jnp.where(j_idx == e_idx * size + sel, 1.0, 0.0).astype(jnp.bfloat16)

    # Exact gather via (up to 3) native bf16 MXU passes: split x into bf16 parts
    # whose sum reconstructs x exactly; every product is value*1.0 or value*0.0.
    rem = x_ref[...].astype(jnp.float32)
    acc = jnp.zeros((x_ref.shape[0], LANE), jnp.float32)
    for _ in range(n_parts):
        part = rem.astype(jnp.bfloat16)
        rem = rem - part.astype(jnp.float32)
        acc = acc + jnp.dot(part, s, preferred_element_type=jnp.float32)
    o_ref[...] = acc.astype(o_ref.dtype)


def binarize_gate_forward(x, weight):
    """x: (..., size), weight: (size,). Returns x[..., argmax(softmax(weight))]."""
    size = weight.shape[-1]
    assert x.shape[-1] == size
    lead_shape = x.shape[:-1]
    m = math.prod(lead_shape)

    # Eval-mode selection, done ONCE outside the grid.  softmax is strictly
    # monotonic, so argmax(softmax(w)) == argmax(w); jnp.argmax matches
    # torch.argmax tie-breaking (first index attaining the max).
    sel = jnp.argmax(weight.astype(jnp.float32), axis=-1).astype(jnp.int32).reshape(1)

    # Natural-layout flatten (pure contiguous regroup, NO transpose): row r of the
    # (rows, LANE*size) slab holds output elements r*LANE .. r*LANE+127, with their
    # `size` candidates interleaved along the lane axis.
    x2 = x.reshape(m, size)
    pad = (-m) % LANE
    if pad:  # only when the flattened size is not lane-aligned (not hit in the demo)
        x2 = jnp.pad(x2, ((0, pad), (0, 0)))
    mp = m + pad
    rows = mp // LANE
    xr = x2.reshape(rows, LANE * size)

    # Row tile: big for HBM-roofline efficiency, aligned to the dtype's sublane
    # packing, and (when rows allow) >=2 grid steps so both v7x TCs get work.
    sub = 8 * max(1, 4 // jnp.dtype(x.dtype).itemsize)   # 8 f32, 16 bf16, 32 int8
    if rows >= 2048:
        tr = 512                      # ~2.5 MiB double-buffered in+out VMEM (f32)
    elif rows >= 2 * sub:
        tr = sub * ((rows // 2) // sub)
    else:
        tr = rows
    grid = (pl.cdiv(rows, tr),)       # ragged last block is masked by Pallas

    # f32 needs 3 exact bf16 parts; bf16 needs only 1.  (Other fp dtypes: 3 is safe.)
    n_parts = 1 if x.dtype == jnp.bfloat16 else 3

    out = pl.pallas_call(
        functools.partial(_binarize_gate_kernel, size=size, n_parts=n_parts),
        out_shape=jax.ShapeDtypeStruct((rows, LANE), x.dtype),
        grid_spec=pltpu.PrefetchScalarGridSpec(
            num_scalar_prefetch=1,
            grid=grid,
            in_specs=[pl.BlockSpec((tr, LANE * size), lambda i, sel_ref: (i, 0))],
            out_specs=pl.BlockSpec((tr, LANE), lambda i, sel_ref: (i, 0)),
        ),
        compiler_params=pltpu.CompilerParams(
            dimension_semantics=("parallel",)),
    )(sel, xr)

    return out.reshape(mp)[:m].reshape(lead_shape)


if __name__ == "__main__":
    key = jax.random.PRNGKey(0)
    kx, kw = jax.random.split(key)

    # Conv-style feature map stacked over `size` gate candidates: (B, C, H, W, size)
    B, C, H, W, SIZE = 2, 4, 16, 16, 4
    x = jax.random.normal(kx, (B, C, H, W, SIZE), dtype=jnp.float32)

    # Module __init__ uses torch.ones(size); add a deterministic perturbation so the
    # argmax selection is non-trivial (still fully deterministic, no checkpoint load).
    weight = jnp.ones((SIZE,), jnp.float32) + 0.1 * jax.random.normal(kw, (SIZE,), jnp.float32)

    out = jax.block_until_ready(binarize_gate_forward(x, weight))

    # Pure-JAX reference of the eval-mode forward
    wn = jax.nn.softmax(weight, axis=-1)
    sel_idx = jnp.argmax(wn, axis=-1)
    ref = x[..., sel_idx]

    assert out.shape == ref.shape == (B, C, H, W)
    assert jnp.allclose(out, ref), "Pallas output mismatch vs reference"
    print("KERNEL_OK")
</pallas_src>

<mosaic_0001>
module attributes {stable_mosaic.version = 11 : i64} {
  func.func @_binarize_gate_kernel(%arg0: i32, %arg1: memref<1xi32, #tpu.memory_space<smem>>, %arg2: memref<8x512xf32, #tpu.memory_space<vmem>>, %arg3: memref<8x128xf32, #tpu.memory_space<vmem>>) attributes {dimension_semantics = [#tpu.dimension_semantics<parallel>], iteration_bounds = array<i64: 2>, scalar_prefetch = 1 : i64, scratch_operands = 0 : i64, tpu.core_type = #tpu.core_type<tc>, window_params = [{transform_indices = @transform_0, window_bounds = array<i64: 8, 512>}, {transform_indices = @transform_1, window_bounds = array<i64: 8, 128>}]} {
    %c0 = arith.constant 0 : index
    %0 = memref.load %arg1[%c0] : memref<1xi32, #tpu.memory_space<smem>>
    %1 = tpu.iota {dimensions = array<i32: 0>} : vector<512x128xi32>
    %2 = tpu.iota {dimensions = array<i32: 1>} : vector<512x128xi32>
    %c4_i32 = arith.constant 4 : i32
    %3 = vector.broadcast %c4_i32 : i32 to vector<512x128xi32>
    %4 = arith.muli %2, %3 : vector<512x128xi32>
    %5 = vector.broadcast %0 : i32 to vector<512x128xi32>
    %6 = arith.addi %4, %5 : vector<512x128xi32>
    %7 = arith.cmpi eq, %1, %6 : vector<512x128xi32>
    %cst = arith.constant 1.000000e+00 : f32
    %cst_0 = arith.constant 0.000000e+00 : f32
    %8 = vector.broadcast %cst : f32 to vector<512x128xf32>
    %9 = vector.broadcast %cst_0 : f32 to vector<512x128xf32>
    %10 = arith.select %7, %8, %9 : vector<512x128xi1>, vector<512x128xf32>
    %11 = arith.truncf %10 : vector<512x128xf32> to vector<512x128xbf16>
    %c0_1 = arith.constant 0 : index
    %c0_2 = arith.constant 0 : index
    %12 = vector.load %arg2[%c0_1, %c0_2] : memref<8x512xf32, #tpu.memory_space<vmem>>, vector<8x512xf32>
    %cst_3 = arith.constant 0.000000e+00 : f32
    %13 = vector.broadcast %cst_3 : f32 to vector<8x128xf32>
    %14 = arith.truncf %12 : vector<8x512xf32> to vector<8x512xbf16>
    %15 = arith.extf %14 : vector<8x512xbf16> to vector<8x512xf32>
    %16 = arith.subf %12, %15 : vector<8x512xf32>
    %cst_4 = arith.constant dense<0.000000e+00> : vector<8x128xf32>
    %17 = tpu.matmul %14, %11, %cst_4 {dimension_numbers = #tpu.dot_dimension_numbers<[1], [0], [0], [1], [0, 0, 1, 1], [], []>} : vector<8x512xbf16>, vector<512x128xbf16>, vector<8x128xf32> -> vector<8x128xf32>
    %18 = arith.addf %13, %17 : vector<8x128xf32>
    %19 = arith.truncf %16 : vector<8x512xf32> to vector<8x512xbf16>
    %20 = arith.extf %19 : vector<8x512xbf16> to vector<8x512xf32>
    %21 = arith.subf %16, %20 : vector<8x512xf32>
    %cst_5 = arith.constant dense<0.000000e+00> : vector<8x128xf32>
    %22 = tpu.matmul %19, %11, %cst_5 {dimension_numbers = #tpu.dot_dimension_numbers<[1], [0], [0], [1], [0, 0, 1, 1], [], []>} : vector<8x512xbf16>, vector<512x128xbf16>, vector<8x128xf32> -> vector<8x128xf32>
    %23 = arith.addf %18, %22 : vector<8x128xf32>
    %24 = arith.truncf %21 : vector<8x512xf32> to vector<8x512xbf16>
    %cst_6 = arith.constant dense<0.000000e+00> : vector<8x128xf32>
    %25 = tpu.matmul %24, %11, %cst_6 {dimension_numbers = #tpu.dot_dimension_numbers<[1], [0], [0], [1], [0, 0, 1, 1], [], []>} : vector<8x512xbf16>, vector<512x128xbf16>, vector<8x128xf32> -> vector<8x128xf32>
    %26 = arith.addf %23, %25 : vector<8x128xf32>
    %c0_7 = arith.constant 0 : index
    %c0_8 = arith.constant 0 : index
    %27 = vector.load %arg3[%c0_7, %c0_8] : memref<8x128xf32, #tpu.memory_space<vmem>>, vector<8x128xf32>
    tpu.vector_store %arg3[%c0_7, %c0_8], %26 {strides = array<i32>} : memref<8x128xf32, #tpu.memory_space<vmem>>, vector<8x128xf32>,
    return
  }
  func.func @transform_0(%arg0: i32, %arg1: memref<1xi32, #tpu.memory_space<smem>>) -> (i32, i32) {
    %c0_i32 = arith.constant 0 : i32
    %c0_i32_0 = arith.constant 0 : i32
    return %arg0, %c0_i32 : i32, i32
  }
  func.func @transform_1(%arg0: i32, %arg1: memref<1xi32, #tpu.memory_space<smem>>) -> (i32, i32) {
    %c0_i32 = arith.constant 0 : i32
    %c0_i32_0 = arith.constant 0 : i32
    return %arg0, %c0_i32 : i32, i32
  }
}

</mosaic_0001>

<llo_original>
// kernel: tpu_custom_call.1
$region0: #{tpu_custom_call.1}
  #allocation0 [shape = 'u32[]', space=smem, size = 0x4, offset = 0x4, fixed_abs, tag = 'smem constant byte address 0x4 - core index']
  #allocation1 [shape = 'u32[144,128]{1,0:T(1,128)}', space=vmem, size = 0x12000, scoped, tag = 'internal scratch']
  #allocation2 [shape = 's32[1]{0}', space=sflag, size = 0x4, scoped, tag = 'scoped memory for tpu_custom_call.1']
  #allocation3 [shape = 's32[1]{0:T(128)S(6)}', space=smem, size = 0x200, scoped, tag = 'prefetched SMEM operand 0']
  %s0 = inlined_call_operand.<no memory space> [shape: s32[1], index: 0, kind: input, shape index: {}]
  %s1 = inlined_call_operand.hbm [shape: f32[16,512], index: 1, kind: input, shape index: {}]
  %s2 = inlined_call_operand.hbm [shape: f32[16,128], index: 2, kind: output, shape index: {}]
  %s3 = sld [smem:[#allocation0]]
  $region41: #{tpu_custom_call.1} parent=0
    _
  %s5 = ssub.s32 1, %s3
  %s6 = scalar_select 0, %s5, %s3
  %7 = sst [smem:[#allocation3]] %s0
  $region1: #{tpu_custom_call.1} parent=0
    #allocation4 [shape = 'u8[32768]{0}', space=vmem, size = 0x8000, scoped, tag = 'input window, operand 1']
    #allocation5 [shape = 's32[2]{0}', space=sflag, size = 0x8, scoped, tag = 'scoped memory for tpu_custom_call.1']
    #allocation6 [shape = 's32[2]{0}', space=sflag, size = 0x8, scoped, tag = 'scoped memory for tpu_custom_call.1']
    #allocation7 [shape = 'u8[8192]{0}', space=vmem, size = 0x2000, scoped, tag = 'output window, operand 0']
    %8 = vsyncpa [#allocation5], 0
    %s9 = scalar_lea.sflag [#allocation5], 1
    %10 = vsyncpa %s9, 0
    %11 = vsyncpa [#allocation6], 0
    %s12 = scalar_lea.sflag [#allocation6], 1
    %13 = vsyncpa %s12, 0
    loop: start=0, step=1, limit=4
    $region2: #{tpu_custom_call.1} parent=1 // loop_pre_header
      _
    $region3: #{tpu_custom_call.1} parent=1 // loop_header
      %s15 = sphi 0, %s19
      %p16 = scmp.ge.s32.totalorder %s15, 4
      %s25 = sphi 0, %s27
      %s28 = sphi 0, %s25
      %s29 = sphi 0, %s28
      %s45 = sphi 0, %s29
      %s51 = sphi 0, %s53
      %s54 = sphi 0, %s51
      %s55 = sphi 0, %s54
      %s71 = sphi 0, %s55
    $region4: #{tpu_custom_call.1} parent=1 // loop_header_branch
      %18 = sbr.rel (%p16) target = $region8
    $region5: #{tpu_custom_call.1} parent=1 // loop_body
      %s20 = ssub.s32 %s15, 1
      %s21 = ssub.s32 %s15, 2
      %s22 = sadd.s32 %s15, 1
      %s23 = ssub.s32 %s15, %s22
      %p24 = scmp.eq.s32.totalorder %s23, 0
      %s26 = sadd.s32 %s25, 1
      %s27 = scalar_select %p24, %s25, %s26
      %p30 = pneg %p24
      %p31 = scmp.eq.s32.totalorder %s15, 1
      %p32 = por %p30, %p31
      %p33 = scmp.ne.s32.totalorder %s25, %s28
      %p34 = scmp.eq.s32.totalorder %s15, 0
      %p35 = por %p33, %p34
      %p36 = scmp.ne.s32.totalorder %s25, %s28
      %p37 = scmp.eq.s32.totalorder %s20, 1
      %p38 = por %p36, %p37
      %p39 = scmp.ne.s32.totalorder %s28, %s29
      %p40 = scmp.eq.s32.totalorder %s20, 0
      %p41 = por %p39, %p40
      %p42 = scmp.ne.s32.totalorder %s28, %s29
      %p43 = scmp.eq.s32.totalorder %s21, 1
      %p44 = por %p42, %p43
      %p46 = scmp.ne.s32.totalorder %s29, %s45
      %p47 = scmp.eq.s32.totalorder %s21, 0
      %p48 = por %p46, %p47
      %s49 = ssub.s32 %s15, %s22
      %p50 = scmp.eq.s32.totalorder %s49, 0
      %s52 = sadd.s32 %s51, 1
      %s53 = scalar_select %p50, %s51, %s52
      %p56 = pneg %p50
      %p57 = scmp.eq.s32.totalorder %s15, 1
      %p58 = por %p56, %p57
      %p59 = scmp.ne.s32.totalorder %s51, %s54
      %p60 = scmp.eq.s32.totalorder %s15, 0
      %p61 = por %p59, %p60
      %p62 = scmp.ne.s32.totalorder %s51, %s54
      %p63 = scmp.eq.s32.totalorder %s20, 1
      %p64 = por %p62, %p63
      %p65 = scmp.ne.s32.totalorder %s54, %s55
      %p66 = scmp.eq.s32.totalorder %s20, 0
      %p67 = por %p65, %p66
      %p68 = scmp.ne.s32.totalorder %s54, %s55
      %p69 = scmp.eq.s32.totalorder %s21, 1
      %p70 = por %p68, %p69
      %p72 = scmp.ne.s32.totalorder %s55, %s71
      %p73 = scmp.eq.s32.totalorder %s21, 0
      %p74 = por %p72, %p73
      %p75 = scmp.le.s32.totalorder 1, %s15
      %p76 = scmp.lt.s32.totalorder %s15, 3
      %p77 = pnand %p75, %p76
      %p78 = pneg %p77
      // Predicated region
      $region9: #{tpu_custom_call.1} parent=5 // pred_check
        _
      $region10: #{tpu_custom_call.1} parent=5 // pred_check_branch
        %80 = sbr.rel (%p77) target = $region12
      $region11: #{tpu_custom_call.1} parent=5 // pred_region
        %s81 = ssub.s32 %s15, 1
      $region12: #{tpu_custom_call.1} parent=5 // pred_fallthru
        _
      %p82 = scmp.lt.s32.totalorder %s15, 2
      // Predicated region
      $region13: #{tpu_custom_call.1} parent=5 // pred_check
        %p83 = pneg %p82
      $region14: #{tpu_custom_call.1} parent=5 // pred_check_branch
        %85 = sbr.rel (%p83) target = $region16
      $region15: #{tpu_custom_call.1} parent=5 // pred_region
        // Predicated region
        $region17: #{tpu_custom_call.1} parent=15 // pred_check
          %p86 = pneg %p35
        $region18: #{tpu_custom_call.1} parent=15 // pred_check_branch
          %88 = sbr.rel (%p86) target = $region20
        $region19: #{tpu_custom_call.1} parent=15 // pred_region
          %s89 = sand.u32 %s25, 1
          %s90 = scalar_lea.sflag [#allocation5], %s89
          %s91 = sand.u32 %s25, 1
          %s92 = smul.addr %s91, 32
          %s93 = scalar_lea.vmem [#allocation4], %s92
          %s95 = ssub.s32 512, 512
          %96 = vsyncadd %s90, %s95
          %s97 = smul.addr %s15, 4
          %s98 = smul.addr %s97, 128
          %s99 = scalar_lea.hbm %s1, %s98
          %s101 = sshll.u32 %s93, 4
          %s102 = int_to_ptr.vmem [resolvable:$true] %s101
          %104 = dma.hbm_to_vmem [thread:$0]  %s99, 512, %s102, %s90
        $region20: #{tpu_custom_call.1} parent=15 // pred_fallthru
          _
      $region16: #{tpu_custom_call.1} parent=5 // pred_fallthru
        _
      %p105 = scmp.le.s32.totalorder 1, %s15
      %p106 = scmp.lt.s32.totalorder %s15, 3
      %p107 = pnand %p105, %p106
      %p108 = pneg %p107
      // Predicated region
      $region21: #{tpu_custom_call.1} parent=5 // pred_check
        _
      $region22: #{tpu_custom_call.1} parent=5 // pred_check_branch
        %110 = sbr.rel (%p107) target = $region24
      $region23: #{tpu_custom_call.1} parent=5 // pred_region
        %s111 = ssub.s32 %s15, 1
        %s112 = sand.u32 %s28, 1
        %s113 = scalar_lea.sflag [#allocation5], %s112
        %s114 = sand.u32 %s28, 1
        %s115 = smul.addr %s114, 32
        %s116 = scalar_lea.vmem [#allocation4], %s115
        // Predicated region
        $region25: #{tpu_custom_call.1} parent=23 // pred_check
          %p117 = pneg %p41
        $region26: #{tpu_custom_call.1} parent=23 // pred_check_branch
          %119 = sbr.rel (%p117) target = $region28
        $region27: #{tpu_custom_call.1} parent=23 // pred_region
          %120 = dma.done %s113, 512
        $region28: #{tpu_custom_call.1} parent=23 // pred_fallthru
          _
        %s121 = sand.u32 %s28, 1
        %s122 = scalar_lea.sflag [#allocation5], %s121
        %s123 = sand.u32 %s28, 1
        %s124 = smul.addr %s123, 32
        %s125 = scalar_lea.vmem [#allocation4], %s124
        %p126 = pneg %p41
        %p127 = pneg %p38
        %p128 = pneg %p67
        %p129 = pneg %p64
        %s130 = sand.u32 %s54, 1
        %s131 = scalar_lea.sflag [#allocation6], %s130
        %s132 = sand.u32 %s54, 1
        %s133 = smul.addr %s132, 8
        %s134 = scalar_lea.vmem [#allocation7], %s133
        %s136 = sld [smem:[#allocation3]]
        %v137 = vlaneseq
        %v138 = vshrl.u32 %v137, 7
        %v139 = vadd.s32 %v138, 8
        %v140 = vadd.s32 %v138, 16
        %v141 = vadd.s32 %v138, 24
        %v142 = vadd.s32 %v138, 32
        %v143 = vadd.s32 %v138, 40
        %v144 = vadd.s32 %v138, 48
        %v145 = vadd.s32 %v138, 56
        %v146 = vadd.s32 %v138, 64
        %v147 = vadd.s32 %v138, 72
        %v148 = vadd.s32 %v138, 80
        %v149 = vadd.s32 %v138, 88
        %v150 = vadd.s32 %v138, 96
        %v151 = vadd.s32 %v138, 104
        %v152 = vadd.s32 %v138, 112
        %v153 = vadd.s32 %v138, 120
        %v154 = vadd.s32 %v138, 128
        %v155 = vadd.s32 %v138, 136
        %v156 = vadd.s32 %v138, 144
        %v157 = vadd.s32 %v138, 152
        %v158 = vadd.s32 %v138, 160
        %v159 = vadd.s32 %v138, 168
        %v160 = vadd.s32 %v138, 176
        %v161 = vadd.s32 %v138, 184
        %v162 = vadd.s32 %v138, 192
        %v163 = vadd.s32 %v138, 200
        %v164 = vadd.s32 %v138, 208
        %v165 = vadd.s32 %v138, 216
        %v166 = vadd.s32 %v138, 224
        %v167 = vadd.s32 %v138, 232
        %v168 = vadd.s32 %v138, 240
        %v169 = vadd.s32 %v138, 248
        %v170 = vadd.s32 %v138, 256
        %v171 = vadd.s32 %v138, 264
        %v172 = vadd.s32 %v138, 272
        %v173 = vadd.s32 %v138, 280
        %v174 = vadd.s32 %v138, 288
        %v175 = vadd.s32 %v138, 296
        %v176 = vadd.s32 %v138, 304
        %v177 = vadd.s32 %v138, 312
        %v178 = vadd.s32 %v138, 320
        %v179 = vadd.s32 %v138, 328
        %v180 = vadd.s32 %v138, 336
        %v181 = vadd.s32 %v138, 344
        %v182 = vadd.s32 %v138, 352
        %v183 = vadd.s32 %v138, 360
        %v184 = vadd.s32 %v138, 368
        %v185 = vadd.s32 %v138, 376
        %v186 = vadd.s32 %v138, 384
        %v187 = vadd.s32 %v138, 392
        %v188 = vadd.s32 %v138, 400
        %v189 = vadd.s32 %v138, 408
        %v190 = vadd.s32 %v138, 416
        %v191 = vadd.s32 %v138, 424
        %v192 = vadd.s32 %v138, 432
        %v193 = vadd.s32 %v138, 440
        %v194 = vadd.s32 %v138, 448
        %v195 = vadd.s32 %v138, 456
        %v196 = vadd.s32 %v138, 464
        %v197 = vadd.s32 %v138, 472
        %v198 = vadd.s32 %v138, 480
        %v199 = vadd.s32 %v138, 488
        %v200 = vadd.s32 %v138, 496
        %v201 = vadd.s32 %v138, 504
        %v202 = vlaneseq
        %v203 = vand.u32 %v202, 127
        %v204 = vmul.u32 %v203, 4
        %v205 = vstv %s136
        %v206 = vadd.s32 %v204, %v205
        %vm207 = vcmp.eq.s32.totalorder %v138, %v206
        %vm208 = vcmp.eq.s32.totalorder %v139, %v206
        %vm209 = vcmp.eq.s32.totalorder %v140, %v206
        %vm210 = vcmp.eq.s32.totalorder %v141, %v206
        %vm211 = vcmp.eq.s32.totalorder %v142, %v206
        %vm212 = vcmp.eq.s32.totalorder %v143, %v206
        %vm213 = vcmp.eq.s32.totalorder %v144, %v206
        %vm214 = vcmp.eq.s32.totalorder %v145, %v206
        %vm215 = vcmp.eq.s32.totalorder %v146, %v206
        %vm216 = vcmp.eq.s32.totalorder %v147, %v206
        %vm217 = vcmp.eq.s32.totalorder %v148, %v206
        %vm218 = vcmp.eq.s32.totalorder %v149, %v206
        %vm219 = vcmp.eq.s32.totalorder %v150, %v206
        %vm220 = vcmp.eq.s32.totalorder %v151, %v206
        %vm221 = vcmp.eq.s32.totalorder %v152, %v206
        %vm222 = vcmp.eq.s32.totalorder %v153, %v206
        %vm223 = vcmp.eq.s32.totalorder %v154, %v206
        %vm224 = vcmp.eq.s32.totalorder %v155, %v206
        %vm225 = vcmp.eq.s32.totalorder %v156, %v206
        %vm226 = vcmp.eq.s32.totalorder %v157, %v206
        %vm227 = vcmp.eq.s32.totalorder %v158, %v206
        %vm228 = vcmp.eq.s32.totalorder %v159, %v206
        %vm229 = vcmp.eq.s32.totalorder %v160, %v206
        %vm230 = vcmp.eq.s32.totalorder %v161, %v206
        %vm231 = vcmp.eq.s32.totalorder %v162, %v206
        %vm232 = vcmp.eq.s32.totalorder %v163, %v206
        %vm233 = vcmp.eq.s32.totalorder %v164, %v206
        %vm234 = vcmp.eq.s32.totalorder %v165, %v206
        %vm235 = vcmp.eq.s32.totalorder %v166, %v206
        %vm236 = vcmp.eq.s32.totalorder %v167, %v206
        %vm237 = vcmp.eq.s32.totalorder %v168, %v206
        %vm238 = vcmp.eq.s32.totalorder %v169, %v206
        %vm239 = vcmp.eq.s32.totalorder %v170, %v206
        %vm240 = vcmp.eq.s32.totalorder %v171, %v206
        %vm241 = vcmp.eq.s32.totalorder %v172, %v206
        %vm242 = vcmp.eq.s32.totalorder %v173, %v206
        %vm243 = vcmp.eq.s32.totalorder %v174, %v206
        %vm244 = vcmp.eq.s32.totalorder %v175, %v206
        %vm245 = vcmp.eq.s32.totalorder %v176, %v206
        %vm246 = vcmp.eq.s32.totalorder %v177, %v206
        %vm247 = vcmp.eq.s32.totalorder %v178, %v206
        %vm248 = vcmp.eq.s32.totalorder %v179, %v206
        %vm249 = vcmp.eq.s32.totalorder %v180, %v206
        %vm250 = vcmp.eq.s32.totalorder %v181, %v206
        %vm251 = vcmp.eq.s32.totalorder %v182, %v206
        %vm252 = vcmp.eq.s32.totalorder %v183, %v206
        %vm253 = vcmp.eq.s32.totalorder %v184, %v206
        %vm254 = vcmp.eq.s32.totalorder %v185, %v206
        %vm255 = vcmp.eq.s32.totalorder %v186, %v206
        %vm256 = vcmp.eq.s32.totalorder %v187, %v206
        %vm257 = vcmp.eq.s32.totalorder %v188, %v206
        %vm258 = vcmp.eq.s32.totalorder %v189, %v206
        %vm259 = vcmp.eq.s32.totalorder %v190, %v206
        %vm260 = vcmp.eq.s32.totalorder %v191, %v206
        %vm261 = vcmp.eq.s32.totalorder %v192, %v206
        %vm262 = vcmp.eq.s32.totalorder %v193, %v206
        %vm263 = vcmp.eq.s32.totalorder %v194, %v206
        %vm264 = vcmp.eq.s32.totalorder %v195, %v206
        %vm265 = vcmp.eq.s32.totalorder %v196, %v206
        %vm266 = vcmp.eq.s32.totalorder %v197, %v206
        %vm267 = vcmp.eq.s32.totalorder %v198, %v206
        %vm268 = vcmp.eq.s32.totalorder %v199, %v206
        %vm269 = vcmp.eq.s32.totalorder %v200, %v206
        %vm270 = vcmp.eq.s32.totalorder %v201, %v206
        %v271 = vsel %vm207, 1.0, 0.0
        %v272 = vsel %vm208, 1.0, 0.0
        %v273 = vsel %vm209, 1.0, 0.0
        %v274 = vsel %vm210, 1.0, 0.0
        %v275 = vsel %vm211, 1.0, 0.0
        %v276 = vsel %vm212, 1.0, 0.0
        %v277 = vsel %vm213, 1.0, 0.0
        %v278 = vsel %vm214, 1.0, 0.0
        %v279 = vsel %vm215, 1.0, 0.0
        %v280 = vsel %vm216, 1.0, 0.0
        %v281 = vsel %vm217, 1.0, 0.0
        %v282 = vsel %vm218, 1.0, 0.0
        %v283 = vsel %vm219, 1.0, 0.0
        %v284 = vsel %vm220, 1.0, 0.0
        %v285 = vsel %vm221, 1.0, 0.0
        %v286 = vsel %vm222, 1.0, 0.0
        %v287 = vsel %vm223, 1.0, 0.0
        %v288 = vsel %vm224, 1.0, 0.0
        %v289 = vsel %vm225, 1.0, 0.0
        %v290 = vsel %vm226, 1.0, 0.0
        %v291 = vsel %vm227, 1.0, 0.0
        %v292 = vsel %vm228, 1.0, 0.0
        %v293 = vsel %vm229, 1.0, 0.0
        %v294 = vsel %vm230, 1.0, 0.0
        %v295 = vsel %vm231, 1.0, 0.0
        %v296 = vsel %vm232, 1.0, 0.0
        %v297 = vsel %vm233, 1.0, 0.0
        %v298 = vsel %vm234, 1.0, 0.0
        %v299 = vsel %vm235, 1.0, 0.0
        %v300 = vsel %vm236, 1.0, 0.0
        %v301 = vsel %vm237, 1.0, 0.0
        %v302 = vsel %vm238, 1.0, 0.0
        %v303 = vsel %vm239, 1.0, 0.0
        %v304 = vsel %vm240, 1.0, 0.0
        %v305 = vsel %vm241, 1.0, 0.0
        %v306 = vsel %vm242, 1.0, 0.0
        %v307 = vsel %vm243, 1.0, 0.0
        %v308 = vsel %vm244, 1.0, 0.0
        %v309 = vsel %vm245, 1.0, 0.0
        %v310 = vsel %vm246, 1.0, 0.0
        %v311 = vsel %vm247, 1.0, 0.0
        %v312 = vsel %vm248, 1.0, 0.0
        %v313 = vsel %vm249, 1.0, 0.0
        %v314 = vsel %vm250, 1.0, 0.0
        %v315 = vsel %vm251, 1.0, 0.0
        %v316 = vsel %vm252, 1.0, 0.0
        %v317 = vsel %vm253, 1.0, 0.0
        %v318 = vsel %vm254, 1.0, 0.0
        %v319 = vsel %vm255, 1.0, 0.0
        %v320 = vsel %vm256, 1.0, 0.0
        %v321 = vsel %vm257, 1.0, 0.0
        %v322 = vsel %vm258, 1.0, 0.0
        %v323 = vsel %vm259, 1.0, 0.0
        %v324 = vsel %vm260, 1.0, 0.0
        %v325 = vsel %vm261, 1.0, 0.0
        %v326 = vsel %vm262, 1.0, 0.0
        %v327 = vsel %vm263, 1.0, 0.0
        %v328 = vsel %vm264, 1.0, 0.0
        %v329 = vsel %vm265, 1.0, 0.0
        %v330 = vsel %vm266, 1.0, 0.0
        %v331 = vsel %vm267, 1.0, 0.0
        %v332 = vsel %vm268, 1.0, 0.0
        %v333 = vsel %vm269, 1.0, 0.0
        %v334 = vsel %vm270, 1.0, 0.0
        %v335 = vpack.c.bf16 %v272, %v271
        %v336 = vpack.c.bf16 %v274, %v273
        %v337 = vpack.c.bf16 %v276, %v275
        %v338 = vpack.c.bf16 %v278, %v277
        %v339 = vpack.c.bf16 %v280, %v279
        %v340 = vpack.c.bf16 %v282, %v281
        %v341 = vpack.c.bf16 %v284, %v283
        %v342 = vpack.c.bf16 %v286, %v285
        %v343 = vpack.c.bf16 %v288, %v287
        %v344 = vpack.c.bf16 %v290, %v289
        %v345 = vpack.c.bf16 %v292, %v291
        %v346 = vpack.c.bf16 %v294, %v293
        %v347 = vpack.c.bf16 %v296, %v295
        %v348 = vpack.c.bf16 %v298, %v297
        %v349 = vpack.c.bf16 %v300, %v299
        %v350 = vpack.c.bf16 %v302, %v301
        %v351 = vpack.c.bf16 %v304, %v303
        %v352 = vpack.c.bf16 %v306, %v305
        %v353 = vpack.c.bf16 %v308, %v307
        %v354 = vpack.c.bf16 %v310, %v309
        %v355 = vpack.c.bf16 %v312, %v311
        %v356 = vpack.c.bf16 %v314, %v313
        %v357 = vpack.c.bf16 %v316, %v315
        %v358 = vpack.c.bf16 %v318, %v317
        %v359 = vpack.c.bf16 %v320, %v319
        %v360 = vpack.c.bf16 %v322, %v321
        %v361 = vpack.c.bf16 %v324, %v323
        %v362 = vpack.c.bf16 %v326, %v325
        %v363 = vpack.c.bf16 %v328, %v327
        %v364 = vpack.c.bf16 %v330, %v329
        %v365 = vpack.c.bf16 %v332, %v331
        %v366 = vpack.c.bf16 %v334, %v333
        %v367 = vld [vmem:[%s116] sm:$0xff]
        %v368 = vld [vmem:[%s116 + $0x8] sm:$0xff]
        %v369 = vld [vmem:[%s116 + $0x10] sm:$0xff]
        %v370 = vld [vmem:[%s116 + $0x18] sm:$0xff]
        %v371 = vpack.c.bf16 %v367, %v367
        %v372 = vpack.c.bf16 %v368, %v368
        %v373 = vpack.c.bf16 %v369, %v369
        %v374 = vpack.c.bf16 %v370, %v370
        %v375 = vunpack.c.l.bf16 %v371
        %v376 = vunpack.c.l.bf16 %v372
        %v377 = vunpack.c.l.bf16 %v373
        %v378 = vunpack.c.l.bf16 %v374
        %v379 = vsub.f32 %v367, %v375
        %v380 = vsub.f32 %v368, %v376
        %v381 = vsub.f32 %v369, %v377
        %v382 = vsub.f32 %v370, %v378
        %v383 = vpack.c.bf16 %v379, %v379
        %v384 = vpack.c.bf16 %v380, %v380
        %v385 = vpack.c.bf16 %v381, %v381
        %v386 = vpack.c.bf16 %v382, %v382
        %v387 = vunpack.c.l.bf16 %v383
        %v388 = vunpack.c.l.bf16 %v384
        %v389 = vunpack.c.l.bf16 %v385
        %v390 = vunpack.c.l.bf16 %v386
        %v391 = vsub.f32 %v379, %v387
        %v392 = vsub.f32 %v380, %v388
        %v393 = vsub.f32 %v381, %v389
        %v394 = vsub.f32 %v382, %v390
        %395 = vmatprep.subr.bf16.mxu0 0
        %396 = vmatpush1.bf16.msra.mxu0 %v335
        %397 = vmatprep.subr.bf16.mxu0 0
        %398 = vmatpush1.bf16.msra.mxu0 %v336
        %399 = vmatprep.subr.bf16.mxu0 0
        %400 = vmatpush1.bf16.msra.mxu0 %v337
        %401 = vmatprep.subr.bf16.mxu0 0
        %402 = vmatpush1.bf16.msra.mxu0 %v338
        %403 = vmatprep.subr.bf16.mxu0 0
        %404 = vmatpush1.bf16.msra.mxu0 %v339
        %405 = vmatprep.subr.bf16.mxu0 0
        %406 = vmatpush1.bf16.msra.mxu0 %v340
        %407 = vmatprep.subr.bf16.mxu0 0
        %408 = vmatpush1.bf16.msra.mxu0 %v341
        %409 = vmatprep.subr.bf16.mxu0 0
        %410 = vmatpush1.bf16.msra.mxu0 %v342
        %411 = vmatprep.subr.bf16.mxu0 0
        %412 = vmatpush1.bf16.msra.mxu0 %v343
        %413 = vmatprep.subr.bf16.mxu0 0
        %414 = vmatpush1.bf16.msra.mxu0 %v344
        %415 = vmatprep.subr.bf16.mxu0 0
        %416 = vmatpush1.bf16.msra.mxu0 %v345
        %417 = vmatprep.subr.bf16.mxu0 0
        %418 = vmatpush1.bf16.msra.mxu0 %v346
        %419 = vmatprep.subr.bf16.mxu0 0
        %420 = vmatpush1.bf16.msra.mxu0 %v347
        %421 = vmatprep.subr.bf16.mxu0 0
        %422 = vmatpush1.bf16.msra.mxu0 %v348
        %423 = vmatprep.subr.bf16.mxu0 0
        %424 = vmatpush1.bf16.msra.mxu0 %v349
        %425 = vmatprep.subr.bf16.mxu0 0
        %426 = vmatpush1.bf16.msra.mxu0 %v350
        %427 = vmatprep.mubr.bf16.mxu0 %v384
        %428 = vmatmul.mubr.bf16.gmra.mrb[0].mxu0 %v383
        %v429 = vpop.f32.mrb[0].mxu0
        %v430 = vadd.f32 0.0, %v429
        %v431 = vpop.f32.mrb[0].mxu0
        %v432 = vpop.f32.mrb[0].mxu0
        %v433 = vpop.f32.mrb[0].mxu0
        %434 = vdwg.mxu0
        %435 = vmatprep.subr.bf16.mxu0 0
        %436 = vmatpush1.bf16.msra.mxu0 %v351
        %437 = vmatprep.subr.bf16.mxu0 0
        %438 = vmatpush1.bf16.msra.mxu0 %v352
        %439 = vmatprep.subr.bf16.mxu0 0
        %440 = vmatpush1.bf16.msra.mxu0 %v353
        %441 = vmatprep.subr.bf16.mxu0 0
        %442 = vmatpush1.bf16.msra.mxu0 %v354
        %443 = vmatprep.subr.bf16.mxu0 0
        %444 = vmatpush1.bf16.msra.mxu0 %v355
        %445 = vmatprep.subr.bf16.mxu0 0
        %446 = vmatpush1.bf16.msra.mxu0 %v356
        %447 = vmatprep.subr.bf16.mxu0 0
        %448 = vmatpush1.bf16.msra.mxu0 %v357
        %449 = vmatprep.subr.bf16.mxu0 0
        %450 = vmatpush1.bf16.msra.mxu0 %v358
        %451 = vmatprep.subr.bf16.mxu0 0
        %452 = vmatpush1.bf16.msra.mxu0 %v359
        %453 = vmatprep.subr.bf16.mxu0 0
        %454 = vmatpush1.bf16.msra.mxu0 %v360
        %455 = vmatprep.subr.bf16.mxu0 0
        %456 = vmatpush1.bf16.msra.mxu0 %v361
        %457 = vmatprep.subr.bf16.mxu0 0
        %458 = vmatpush1.bf16.msra.mxu0 %v362
        %459 = vmatprep.subr.bf16.mxu0 0
        %460 = vmatpush1.bf16.msra.mxu0 %v363
        %461 = vmatprep.subr.bf16.mxu0 0
        %462 = vmatpush1.bf16.msra.mxu0 %v364
        %463 = vmatprep.subr.bf16.mxu0 0
        %464 = vmatpush1.bf16.msra.mxu0 %v365
        %465 = vmatprep.subr.bf16.mxu0 0
        %466 = vmatpush1.bf16.msra.mxu0 %v366
        %467 = vmatprep.mubr.bf16.mxu0 %v386
        %468 = vmatmul.mubr.bf16.gmra.mrb[0].mxu0 %v385
        %v469 = vpop.f32.mrb[0].mxu0
        %v470 = vadd.f32 %v430, %v469
        %v471 = vpop.f32.mrb[0].mxu0
        %v472 = vpop.f32.mrb[0].mxu0
        %v473 = vpop.f32.mrb[0].mxu0
        %474 = vdwg.mxu0
        %475 = vmatprep.subr.bf16.mxu0 0
        %476 = vmatpush1.bf16.msra.mxu0 %v335
        %477 = vmatprep.subr.bf16.mxu0 0
        %478 = vmatpush1.bf16.msra.mxu0 %v336
        %479 = vmatprep.subr.bf16.mxu0 0
        %480 = vmatpush1.bf16.msra.mxu0 %v337
        %481 = vmatprep.subr.bf16.mxu0 0
        %482 = vmatpush1.bf16.msra.mxu0 %v338
        %483 = vmatprep.subr.bf16.mxu0 0
        %484 = vmatpush1.bf16.msra.mxu0 %v339
        %485 = vmatprep.subr.bf16.mxu0 0
        %486 = vmatpush1.bf16.msra.mxu0 %v340
        %487 = vmatprep.subr.bf16.mxu0 0
        %488 = vmatpush1.bf16.msra.mxu0 %v341
        %489 = vmatprep.subr.bf16.mxu0 0
        %490 = vmatpush1.bf16.msra.mxu0 %v342
        %491 = vmatprep.subr.bf16.mxu0 0
        %492 = vmatpush1.bf16.msra.mxu0 %v343
        %493 = vmatprep.subr.bf16.mxu0 0
        %494 = vmatpush1.bf16.msra.mxu0 %v344
        %495 = vmatprep.subr.bf16.mxu0 0
        %496 = vmatpush1.bf16.msra.mxu0 %v345
        %497 = vmatprep.subr.bf16.mxu0 0
        %498 = vmatpush1.bf16.msra.mxu0 %v346
        %499 = vmatprep.subr.bf16.mxu0 0
        %500 = vmatpush1.bf16.msra.mxu0 %v347
        %501 = vmatprep.subr.bf16.mxu0 0
        %502 = vmatpush1.bf16.msra.mxu0 %v348
        %503 = vmatprep.subr.bf16.mxu0 0
        %504 = vmatpush1.bf16.msra.mxu0 %v349
        %505 = vmatprep.subr.bf16.mxu0 0
        %506 = vmatpush1.bf16.msra.mxu0 %v350
        %507 = vmatprep.mubr.bf16.mxu0 %v372
        %508 = vmatmul.mubr.bf16.gmra.mrb[0].mxu0 %v371
        %v509 = vpop.f32.mrb[0].mxu0
        %v510 = vadd.f32 %v470, %v509
        %v511 = vpop.f32.mrb[0].mxu0
        %v512 = vpop.f32.mrb[0].mxu0
        %v513 = vpop.f32.mrb[0].mxu0
        %514 = vdwg.mxu0
        %515 = vmatprep.subr.bf16.mxu0 0
        %516 = vmatpush1.bf16.msra.mxu0 %v351
        %517 = vmatprep.subr.bf16.mxu0 0
        %518 = vmatpush1.bf16.msra.mxu0 %v352
        %519 = vmatprep.subr.bf16.mxu0 0
        %520 = vmatpush1.bf16.msra.mxu0 %v353
        %521 = vmatprep.subr.bf16.mxu0 0
        %522 = vmatpush1.bf16.msra.mxu0 %v354
        %523 = vmatprep.subr.bf16.mxu0 0
        %524 = vmatpush1.bf16.msra.mxu0 %v355
        %525 = vmatprep.subr.bf16.mxu0 0
        %526 = vmatpush1.bf16.msra.mxu0 %v356
        %527 = vmatprep.subr.bf16.mxu0 0
        %528 = vmatpush1.bf16.msra.mxu0 %v357
        %529 = vmatprep.subr.bf16.mxu0 0
        %530 = vmatpush1.bf16.msra.mxu0 %v358
        %531 = vmatprep.subr.bf16.mxu0 0
        %532 = vmatpush1.bf16.msra.mxu0 %v359
        %533 = vmatprep.subr.bf16.mxu0 0
        %534 = vmatpush1.bf16.msra.mxu0 %v360
        %535 = vmatprep.subr.bf16.mxu0 0
        %536 = vmatpush1.bf16.msra.mxu0 %v361
        %537 = vmatprep.subr.bf16.mxu0 0
        %538 = vmatpush1.bf16.msra.mxu0 %v362
        %539 = vmatprep.subr.bf16.mxu0 0
        %540 = vmatpush1.bf16.msra.mxu0 %v363
        %541 = vmatprep.subr.bf16.mxu0 0
        %542 = vmatpush1.bf16.msra.mxu0 %v364
        %543 = vmatprep.subr.bf16.mxu0 0
        %544 = vmatpush1.bf16.msra.mxu0 %v365
        %545 = vmatprep.subr.bf16.mxu0 0
        %546 = vmatpush1.bf16.msra.mxu0 %v366
        %547 = vmatprep.mubr.bf16.mxu0 %v374
        %548 = vmatmul.mubr.bf16.gmra.mrb[0].mxu0 %v373
        %v549 = vpop.f32.mrb[0].mxu0
        %v550 = vadd.f32 %v510, %v549
        %v551 = vpop.f32.mrb[0].mxu0
        %v552 = vpop.f32.mrb[0].mxu0
        %v553 = vpop.f32.mrb[0].mxu0
        %554 = vdwg.mxu0
        %v555 = vpack.c.bf16 %v391, %v391
        %v556 = vpack.c.bf16 %v392, %v392
        %v557 = vpack.c.bf16 %v393, %v393
        %v558 = vpack.c.bf16 %v394, %v394
        %559 = vmatprep.subr.bf16.mxu0 0
        %560 = vmatpush1.bf16.msra.mxu0 %v335
        %561 = vmatprep.subr.bf16.mxu0 0
        %562 = vmatpush1.bf16.msra.mxu0 %v336
        %563 = vmatprep.subr.bf16.mxu0 0
        %564 = vmatpush1.bf16.msra.mxu0 %v337
        %565 = vmatprep.subr.bf16.mxu0 0
        %566 = vmatpush1.bf16.msra.mxu0 %v338
        %567 = vmatprep.subr.bf16.mxu0 0
        %568 = vmatpush1.bf16.msra.mxu0 %v339
        %569 = vmatprep.subr.bf16.mxu0 0
        %570 = vmatpush1.bf16.msra.mxu0 %v340
        %571 = vmatprep.subr.bf16.mxu0 0
        %572 = vmatpush1.bf16.msra.mxu0 %v341
        %573 = vmatprep.subr.bf16.mxu0 0
        %574 = vmatpush1.bf16.msra.mxu0 %v342
        %575 = vmatprep.subr.bf16.mxu0 0
        %576 = vmatpush1.bf16.msra.mxu0 %v343
        %577 = vmatprep.subr.bf16.mxu0 0
        %578 = vmatpush1.bf16.msra.mxu0 %v344
        %579 = vmatprep.subr.bf16.mxu0 0
        %580 = vmatpush1.bf16.msra.mxu0 %v345
        %581 = vmatprep.subr.bf16.mxu0 0
        %582 = vmatpush1.bf16.msra.mxu0 %v346
        %583 = vmatprep.subr.bf16.mxu0 0
        %584 = vmatpush1.bf16.msra.mxu0 %v347
        %585 = vmatprep.subr.bf16.mxu0 0
        %586 = vmatpush1.bf16.msra.mxu0 %v348
        %587 = vmatprep.subr.bf16.mxu0 0
        %588 = vmatpush1.bf16.msra.mxu0 %v349
        %589 = vmatprep.subr.bf16.mxu0 0
        %590 = vmatpush1.bf16.msra.mxu0 %v350
        %591 = vmatprep.mubr.bf16.mxu0 %v556
        %592 = vmatmul.mubr.bf16.gmra.mrb[0].mxu0 %v555
        %v593 = vpop.f32.mrb[0].mxu0
        %v594 = vadd.f32 0.0, %v593
        %v595 = vpop.f32.mrb[0].mxu0
        %v596 = vpop.f32.mrb[0].mxu0
        %v597 = vpop.f32.mrb[0].mxu0
        %598 = vdwg.mxu0
        %599 = vmatprep.subr.bf16.mxu0 0
        %600 = vmatpush1.bf16.msra.mxu0 %v351
        %601 = vmatprep.subr.bf16.mxu0 0
        %602 = vmatpush1.bf16.msra.mxu0 %v352
        %603 = vmatprep.subr.bf16.mxu0 0
        %604 = vmatpush1.bf16.msra.mxu0 %v353
        %605 = vmatprep.subr.bf16.mxu0 0
        %606 = vmatpush1.bf16.msra.mxu0 %v354
        %607 = vmatprep.subr.bf16.mxu0 0
        %608 = vmatpush1.bf16.msra.mxu0 %v355
        %609 = vmatprep.subr.bf16.mxu0 0
        %610 = vmatpush1.bf16.msra.mxu0 %v356
        %611 = vmatprep.subr.bf16.mxu0 0
        %612 = vmatpush1.bf16.msra.mxu0 %v357
        %613 = vmatprep.subr.bf16.mxu0 0
        %614 = vmatpush1.bf16.msra.mxu0 %v358
        %615 = vmatprep.subr.bf16.mxu0 0
        %616 = vmatpush1.bf16.msra.mxu0 %v359
        %617 = vmatprep.subr.bf16.mxu0 0
        %618 = vmatpush1.bf16.msra.mxu0 %v360
        %619 = vmatprep.subr.bf16.mxu0 0
        %620 = vmatpush1.bf16.msra.mxu0 %v361
        %621 = vmatprep.subr.bf16.mxu0 0
        %622 = vmatpush1.bf16.msra.mxu0 %v362
        %623 = vmatprep.subr.bf16.mxu0 0
        %624 = vmatpush1.bf16.msra.mxu0 %v363
        %625 = vmatprep.subr.bf16.mxu0 0
        %626 = vmatpush1.bf16.msra.mxu0 %v364
        %627 = vmatprep.subr.bf16.mxu0 0
        %628 = vmatpush1.bf16.msra.mxu0 %v365
        %629 = vmatprep.subr.bf16.mxu0 0
        %630 = vmatpush1.bf16.msra.mxu0 %v366
        %631 = vmatprep.mubr.bf16.mxu0 %v558
        %632 = vmatmul.mubr.bf16.gmra.mrb[0].mxu0 %v557
        %v633 = vpop.f32.mrb[0].mxu0
        %v634 = vadd.f32 %v594, %v633
        %v635 = vpop.f32.mrb[0].mxu0
        %v636 = vpop.f32.mrb[0].mxu0
        %v637 = vpop.f32.mrb[0].mxu0
        %638 = vdwg.mxu0
        %v639 = vadd.f32 %v550, %v634
        %640 = vst [vmem:[%s134] sm:$0xff] %v639
        %s641 = sand.u32 %s54, 1
        %s642 = scalar_lea.sflag [#allocation6], %s641
        %s643 = sand.u32 %s54, 1
        %s644 = smul.addr %s643, 8
        %s645 = scalar_lea.vmem [#allocation7], %s644
        // Predicated region
        $region29: #{tpu_custom_call.1} parent=23 // pred_check
          %p646 = pneg %p64
        $region30: #{tpu_custom_call.1} parent=23 // pred_check_branch
          %648 = sbr.rel (%p646) target = $region32
        $region31: #{tpu_custom_call.1} parent=23 // pred_region
          %s650 = ssub.s32 128, 128
          %651 = vsyncadd %s642, %s650
          %s652 = smul.addr %s20, 128
          %s653 = scalar_lea.hbm %s2, %s652
          %s655 = sshll.u32 %s645, 4
          %s656 = int_to_ptr.vmem [resolvable:$true] %s655
          %658 = dma.vmem_to_hbm [thread:$0]  %s656, 128, %s653, %s642
        $region32: #{tpu_custom_call.1} parent=23 // pred_fallthru
          _
      $region24: #{tpu_custom_call.1} parent=5 // pred_fallthru
        _
      %p659 = scmp.le.s32.totalorder 2, %s15
      // Predicated region
      $region33: #{tpu_custom_call.1} parent=5 // pred_check
        %p660 = pneg %p659
      $region34: #{tpu_custom_call.1} parent=5 // pred_check_branch
        %662 = sbr.rel (%p660) target = $region36
      $region35: #{tpu_custom_call.1} parent=5 // pred_region
        %s663 = ssub.s32 %s15, 2
        // Predicated region
        $region37: #{tpu_custom_call.1} parent=35 // pred_check
          %p664 = pneg %p70
        $region38: #{tpu_custom_call.1} parent=35 // pred_check_branch
          %666 = sbr.rel (%p664) target = $region40
        $region39: #{tpu_custom_call.1} parent=35 // pred_region
          %s667 = sand.u32 %s55, 1
          %s668 = scalar_lea.sflag [#allocation6], %s667
          %s669 = sand.u32 %s55, 1
          %s670 = smul.addr %s669, 8
          %s671 = scalar_lea.vmem [#allocation7], %s670
          %672 = dma.done %s668, 128
        $region40: #{tpu_custom_call.1} parent=35 // pred_fallthru
          _
      $region36: #{tpu_custom_call.1} parent=5 // pred_fallthru
        _
    $region6: #{tpu_custom_call.1} parent=1 // loop_footer
      %s19 = sadd.s32 1, %s15
    $region7: #{tpu_custom_call.1} parent=1 // loop_footer_branch
      %14 = sbr.rel target = $region3
    $region8: #{tpu_custom_call.1} parent=1 // loop_exit
      _
    %673 = vsyncpa [#allocation5], 1
    %s674 = scalar_lea.sflag [#allocation5], 1
    %675 = vsyncpa %s674, 1
    %676 = vsyncpa [#allocation6], 1
    %s677 = scalar_lea.sflag [#allocation6], 1
    %678 = vsyncpa %s677, 1

</llo_original>
